<compile_context>
chip_gen: v7x
topology: tpu7x:2x2x1
jax: 0.10.0
libtpu: 0.0.40
codegen_flags: <defaults>
</compile_context>

<pallas_src>
import functools

import jax
import jax.numpy as jnp
from jax import lax
from jax.experimental import pallas as pl
from jax.experimental.pallas import tpu as pltpu


# ---------------------------------------------------------------------------
# Helpers: VMEM budget & tile selection
# ---------------------------------------------------------------------------
def _round_up(x, m):
    return (x + m - 1) // m * m


def _vmem_budget_bytes():
    """Per-core VMEM budget = physical capacity minus headroom for Mosaic."""
    cap = 128 * 1024 * 1024
    try:
        info = pltpu.get_tpu_info()
        cap = int(getattr(info, "vmem_capacity_bytes", cap) or cap)
    except Exception:
        pass
    # 3/4 of physical: ~96 MiB on v5e/v6e, ~48 MiB on v7x.
    return max(cap * 3 // 4, 16 * 1024 * 1024)


def _lane_tile_candidates(dim):
    """Legal lane-dim tiles (multiple of 128, or the full dim), descending."""
    cands = {dim}
    for c in (4096, 2048, 1536, 1024, 512, 256, 128):
        if c < dim and dim % c == 0:
            cands.add(c)
    return sorted(cands, reverse=True)


def _row_tiles(rows):
    """(padded_rows, row_tile) with a 128 floor once rows >= 128."""
    if rows >= 128:
        padded = _round_up(rows, 128)
        for tr in (512, 256, 128):
            if padded % tr == 0:
                return padded, tr
        return padded, 128
    padded = _round_up(max(rows, 1), 8)
    return padded, padded


def _seq_tile_candidates(seq_len):
    """Query-tile candidates (descending), preferring a 128 floor."""
    cands = [c for c in (1024, 512, 256, 128) if seq_len % c == 0]
    if cands:
        return cands
    # TODO(synk): pad T / masked tail tiles instead of falling back to divisors.
    for c in range(min(seq_len, 512), 7, -1):
        if seq_len % c == 0 and c % 8 == 0:
            return [c]
    return [seq_len]


def _pick_heads_per_step(num_heads, head_dim):
    """Pack heads so the packed width reaches ~128 lanes (MXU / vreg width)."""
    pack = 1
    for cand in range(1, num_heads + 1):
        if num_heads % cand != 0:
            continue
        pack = cand
        if cand * head_dim >= 128:
            break
    return pack


# ---------------------------------------------------------------------------
# Kernel 1: fused QKV projection  x(R,E) @ W(E,3E) + b  (K-tiled, f32 acc)
# ---------------------------------------------------------------------------
def _qkv_proj_kernel(x_ref, w_ref, b_ref, o_ref, acc_ref):
    k = pl.program_id(2)

    @pl.when(k == 0)
    def _():
        acc_ref[...] = jnp.zeros_like(acc_ref)

    acc_ref[...] += jnp.dot(x_ref[...], w_ref[...],
                            preferred_element_type=jnp.float32)

    @pl.when(k == pl.num_programs(2) - 1)
    def _():
        o_ref[...] = (acc_ref[...] + b_ref[...]).astype(o_ref.dtype)


def _qkv_projection(x2d, w_packed, b_packed, *, out_dtype, vmem_budget):
    R, E = x2d.shape
    N = w_packed.shape[1]
    cb = jnp.dtype(x2d.dtype).itemsize
    ob = jnp.dtype(out_dtype).itemsize

    Rp, tr = _row_tiles(R)
    if Rp != R:
        x2d = jnp.pad(x2d, ((0, Rp - R), (0, 0)))

    # Pick (tn, tk) under the VMEM budget: double-buffered inputs + f32 acc + out.
    tn_cands = _lane_tile_candidates(N)
    tk_cands = _lane_tile_candidates(E)
    budget = int(vmem_budget * 0.9)
    tn, tk = tn_cands[-1], tk_cands[-1]
    found = False
    for tn_c in tn_cands:
        for tk_c in tk_cands:
            need = (2 * (tr * tk_c + tk_c * tn_c) * cb + 2 * tn_c * 4
                    + tr * tn_c * 4 + 2 * tr * tn_c * ob)
            if need <= budget:
                tn, tk = tn_c, tk_c
                found = True
                break
        if found:
            break

    # Grid order: the operand whose block index depends only on the OUTER
    # parallel axis stays VMEM-resident across the inner sweep (when tk == E),
    # so put the larger operand there to avoid re-streaming it from HBM.
    weight_major = (E * N) >= (Rp * E)
    if weight_major:
        grid = (N // tn, Rp // tr, E // tk)
        x_map = lambda c, r, k: (r, k)
        w_map = lambda c, r, k: (k, c)
        b_map = lambda c, r, k: (0, c)
        o_map = lambda c, r, k: (r, c)
    else:
        grid = (Rp // tr, N // tn, E // tk)
        x_map = lambda r, c, k: (r, k)
        w_map = lambda r, c, k: (k, c)
        b_map = lambda r, c, k: (0, c)
        o_map = lambda r, c, k: (r, c)

    out = pl.pallas_call(
        _qkv_proj_kernel,
        out_shape=jax.ShapeDtypeStruct((Rp, N), out_dtype),
        grid_spec=pltpu.PrefetchScalarGridSpec(
            num_scalar_prefetch=0,
            grid=grid,
            in_specs=[
                pl.BlockSpec((tr, tk), x_map),
                pl.BlockSpec((tk, tn), w_map),
                pl.BlockSpec((1, tn), b_map),
            ],
            out_specs=pl.BlockSpec((tr, tn), o_map),
            scratch_shapes=[pltpu.VMEM((tr, tn), jnp.float32)],
        ),
        compiler_params=pltpu.CompilerParams(
            dimension_semantics=("parallel", "parallel", "arbitrary"),
            vmem_limit_bytes=vmem_budget,
        ),
    )(x2d, w_packed, b_packed)
    return out[:R] if Rp != R else out


# ---------------------------------------------------------------------------
# Kernel 2: per-(batch, query-tile, head-pack) attention with the output
#           projection accumulated over the (innermost, "arbitrary") head axis.
# ---------------------------------------------------------------------------
def _attention_kernel(q_ref, k_ref, v_ref, mask_ref, wo_ref, bo_ref,
                      out_ref, acc_ref, *, heads_per_step, head_dim,
                      wo_resident):
    hp = pl.program_id(2)

    @pl.when(hp == 0)
    def _():
        acc_ref[...] = jnp.zeros_like(acc_ref)

    # torch.max(attn_weights, finfo.min) clamp folded into the mask load: any
    # finite score added to this floor stays finite, and a fully-masked row
    # still softmaxes to uniform, matching the reference behaviour.  One VPU
    # clamp per (b, q-tile) instead of per head.
    mask = jnp.maximum(mask_ref[0, 0], jnp.finfo(jnp.float32).min * 0.5)

    for p in range(heads_per_step):
        q = q_ref[0, p]          # (tq, hd) -- 1/sqrt(hd) already folded into W_q
        k = k_ref[0, p]          # (T,  hd)
        v = v_ref[0, p]          # (T,  hd)

        # q @ k^T without materializing a transpose: contract the minor dims.
        s = lax.dot_general(q, k, dimension_numbers=(((1,), (1,)), ((), ())),
                            preferred_element_type=jnp.float32)      # (tq, T)
        s = s + mask

        # Numerically-stable softmax in f32; exact EUP reciprocal.
        s = s - jnp.max(s, axis=-1, keepdims=True)
        e = jnp.exp(s)
        probs = e * pl.reciprocal(jnp.sum(e, axis=-1, keepdims=True),
                                  approx=False)

        ctx = jnp.dot(probs.astype(v.dtype), v,
                      preferred_element_type=jnp.float32)             # (tq, hd)

        # Output projection folded in: accumulate ctx_h @ W_out[rows of head h].
        # wo_ref is either the full VMEM-resident (E, E) weight (slice rows for
        # the global head) or the streamed (P*hd, E) block for this head pack.
        base = hp * heads_per_step if wo_resident else 0
        row0 = (base + p) * head_dim
        w_rows = wo_ref[pl.ds(row0, head_dim), :]                      # (hd, E)
        acc_ref[...] += jnp.dot(ctx.astype(w_rows.dtype), w_rows,
                                preferred_element_type=jnp.float32)

    @pl.when(hp == pl.num_programs(2) - 1)
    def _():
        out_ref[0] = (acc_ref[...] + bo_ref[...]).astype(out_ref.dtype)


# ---------------------------------------------------------------------------
# Wrapper
# ---------------------------------------------------------------------------
def opt_attention(hidden_states, attention_mask, w_qkv, b_qkv, w_out, b_out,
                  *, num_heads, compute_dtype=jnp.bfloat16):
    """OPTAttention forward.

    hidden_states : (B, T, E)
    attention_mask: (B, 1, T, T) additive mask
    w_qkv (E, 3E), b_qkv (1, 3E): fused qkv_proj params in the PyTorch layout
        (per-head-interleaved [q_h | k_h | v_h] output columns).
    w_out (E, E),  b_out (1, E):  out_proj params.
    compute_dtype: matmul-operand dtype (bf16 default); accumulation is f32.

    Returns (attn_output (B,T,E), key_states (B,H,T,hd), value_states (B,H,T,hd)).
    """
    B, T, E = hidden_states.shape
    H = num_heads
    hd = E // H
    R = B * T
    scaling = hd ** (-0.5)
    in_dtype = hidden_states.dtype
    budget = _vmem_budget_bytes()
    cb = jnp.dtype(compute_dtype).itemsize
    ob = jnp.dtype(in_dtype).itemsize

    # --- One-time host-side weight repack: interleaved [q_h|k_h|v_h] -> [Q|K|V]
    #     with the attention scaling folded into the Q columns and Q bias. -----
    w_r = w_qkv.astype(jnp.float32).reshape(E, H, 3, hd)
    b_r = b_qkv.astype(jnp.float32).reshape(1, H, 3, hd)
    w_packed = jnp.concatenate(
        [(w_r[:, :, 0, :] * scaling).reshape(E, E),
         w_r[:, :, 1, :].reshape(E, E),
         w_r[:, :, 2, :].reshape(E, E)], axis=-1).astype(compute_dtype)  # (E,3E)
    b_packed = jnp.concatenate(
        [(b_r[:, :, 0, :] * scaling).reshape(1, E),
         b_r[:, :, 1, :].reshape(1, E),
         b_r[:, :, 2, :].reshape(1, E)], axis=-1)                        # f32 (1,3E)

    # --- Kernel 1: fused QKV projection, lane-dense (R, 3E) output slab. ------
    x2d = hidden_states.reshape(R, E).astype(compute_dtype)
    qkv = _qkv_projection(x2d, w_packed, b_packed,
                          out_dtype=compute_dtype, vmem_budget=budget)

    # Layout plumbing in the wrapper (not in-kernel): split heads.
    qkvh = qkv.reshape(B, T, 3, H, hd).transpose(2, 0, 3, 1, 4)   # (3,B,H,T,hd)
    q_heads, key_c, value_c = qkvh[0], qkvh[1], qkvh[2]
    key_states = key_c.astype(in_dtype)                            # past_key_value[0]
    value_states = value_c.astype(in_dtype)                        # past_key_value[1]

    # --- Kernel 2 configuration --------------------------------------------
    heads_per_step = _pick_heads_per_step(H, hd)

    # W_out residency: keep the whole (E, E) weight in VMEM (streamed once per
    # call) when it fits comfortably, else stream a (P*hd, E) block per pack.
    wo_bytes = E * E * cb
    wo_resident = wo_bytes <= budget // 3
    if (heads_per_step * hd) % 8 != 0:
        wo_resident = True   # streamed block rows must be sublane aligned

    # Query-tile size under the VMEM budget.
    tq_cands = _seq_tile_candidates(T)
    fixed = (wo_bytes if wo_resident else 2 * heads_per_step * hd * E * cb)
    fixed += 2 * E * 4                                      # out-proj bias
    fixed += 2 * (2 * heads_per_step * T * hd * cb)         # K and V, double-buffered
    tq = tq_cands[-1]
    for cand in tq_cands:
        need = (fixed + 2 * heads_per_step * cand * hd * cb   # q block
                + 2 * cand * T * 4                            # mask block
                + 2 * cand * E * ob                           # output block
                + cand * E * 4)                               # f32 accumulator
        if need <= int(budget * 0.9):
            tq = cand
            break

    if wo_resident:
        wo_spec = pl.BlockSpec((E, E), lambda b, qi, h: (0, 0))
    else:
        wo_spec = pl.BlockSpec((heads_per_step * hd, E), lambda b, qi, h: (h, 0))

    kernel = functools.partial(_attention_kernel,
                               heads_per_step=heads_per_step,
                               head_dim=hd,
                               wo_resident=wo_resident)

    attn_output = pl.pallas_call(
        kernel,
        out_shape=jax.ShapeDtypeStruct((B, T, E), in_dtype),
        grid_spec=pltpu.PrefetchScalarGridSpec(
            num_scalar_prefetch=0,
            grid=(B, T // tq, H // heads_per_step),
            in_specs=[
                pl.BlockSpec((1, heads_per_step, tq, hd),
                             lambda b, qi, h: (b, h, qi, 0)),
                pl.BlockSpec((1, heads_per_step, T, hd),
                             lambda b, qi, h: (b, h, 0, 0)),
                pl.BlockSpec((1, heads_per_step, T, hd),
                             lambda b, qi, h: (b, h, 0, 0)),
                pl.BlockSpec((1, 1, tq, T), lambda b, qi, h: (b, 0, qi, 0)),
                wo_spec,
                pl.BlockSpec((1, E), lambda b, qi, h: (0, 0)),
            ],
            out_specs=pl.BlockSpec((1, tq, E), lambda b, qi, h: (b, qi, 0)),
            scratch_shapes=[pltpu.VMEM((tq, E), jnp.float32)],
        ),
        compiler_params=pltpu.CompilerParams(
            dimension_semantics=("parallel", "parallel", "arbitrary"),
            vmem_limit_bytes=budget,
        ),
    )(q_heads, key_c, value_c, attention_mask.astype(jnp.float32),
      w_out.astype(compute_dtype), b_out.astype(jnp.float32))

    return attn_output, key_states, value_states


# ---------------------------------------------------------------------------
# Pure-JAX reference mirroring the PyTorch code path (for verification).
# ---------------------------------------------------------------------------
def opt_attention_reference(hidden_states, attention_mask, w_qkv, b_qkv, w_out,
                            b_out, *, num_heads):
    B, T, E = hidden_states.shape
    head_dim = E // num_heads
    scaling = head_dim ** (-0.5)

    qkv = hidden_states @ w_qkv + b_qkv[0]                        # (B, T, 3E)
    qkv = qkv.reshape(B, T, num_heads, 3 * head_dim).transpose(0, 2, 1, 3)
    q, k, v = jnp.split(qkv, 3, axis=-1)                          # (B, H, T, hd)

    q = (q * scaling).reshape(B * num_heads, T, head_dim)
    k = k.reshape(B * num_heads, T, head_dim)
    v = v.reshape(B * num_heads, T, head_dim)

    w = jnp.einsum("bqd,bkd->bqk", q, k)
    w = w.reshape(B, num_heads, T, T) + attention_mask
    w = jnp.maximum(w, jnp.finfo(w.dtype).min)
    w = w.reshape(B * num_heads, T, T)
    w = jax.nn.softmax(w, axis=-1)

    o = jnp.einsum("bqk,bkd->bqd", w, v)
    o = o.reshape(B, num_heads, T, head_dim).transpose(0, 2, 1, 3).reshape(B, T, E)
    o = o @ w_out + b_out[0]
    return (o,
            k.reshape(B, num_heads, T, head_dim),
            v.reshape(B, num_heads, T, head_dim))


if __name__ == "__main__":
    B, T, E, H = 2, 8, 32, 4   # batch, seq, embed_dim, num_heads (head_dim = 8)

    key = jax.random.PRNGKey(0)
    kx, kq, kbq, ko, kbo = jax.random.split(key, 5)

    x = jax.random.normal(kx, (B, T, E), dtype=jnp.float32)
    w_qkv = 0.02 * jax.random.normal(kq, (E, 3 * E), dtype=jnp.float32)
    b_qkv = 0.02 * jax.random.normal(kbq, (1, 3 * E), dtype=jnp.float32)
    w_out = 0.02 * jax.random.normal(ko, (E, E), dtype=jnp.float32)
    b_out = 0.02 * jax.random.normal(kbo, (1, E), dtype=jnp.float32)

    # Causal additive mask, shape (B, 1, T, T): 0 on/below diagonal, -1e9 above.
    causal = jnp.where(jnp.tril(jnp.ones((T, T), dtype=bool)), 0.0, -1e9)
    attention_mask = jnp.broadcast_to(causal, (B, 1, T, T)).astype(jnp.float32)

    ref_out, ref_k, ref_v = opt_attention_reference(
        x, attention_mask, w_qkv, b_qkv, w_out, b_out, num_heads=H)

    # Full-precision (f32 operand) path.
    out32, k32, v32 = opt_attention(
        x, attention_mask, w_qkv, b_qkv, w_out, b_out,
        num_heads=H, compute_dtype=jnp.float32)
    jax.block_until_ready((out32, k32, v32))
    assert out32.shape == (B, T, E)
    assert k32.shape == (B, H, T, E // H) and v32.shape == (B, H, T, E // H)
    assert jnp.allclose(k32, ref_k, rtol=2e-2, atol=1e-3)
    assert jnp.allclose(v32, ref_v, rtol=2e-2, atol=1e-3)
    assert jnp.allclose(out32, ref_out, rtol=2e-2, atol=1e-3)

    # Default bf16-operand path (f32 accumulation): looser tolerances.
    out16, k16, v16 = opt_attention(
        x, attention_mask, w_qkv, b_qkv, w_out, b_out, num_heads=H)
    jax.block_until_ready((out16, k16, v16))
    assert out16.dtype == x.dtype and k16.dtype == x.dtype
    assert jnp.allclose(k16, ref_k, rtol=5e-2, atol=1e-2)
    assert jnp.allclose(v16, ref_v, rtol=5e-2, atol=1e-2)
    assert jnp.allclose(out16, ref_out, rtol=5e-2, atol=1e-2)

    print("KERNEL_OK")
</pallas_src>

<mosaic_0001>
module attributes {stable_mosaic.version = 11 : i64} {
  func.func @_qkv_proj_kernel(%arg0: i32, %arg1: i32, %arg2: i32, %arg3: memref<16x32xf32, #tpu.memory_space<vmem>>, %arg4: memref<32x96xf32, #tpu.memory_space<vmem>>, %arg5: memref<1x96xf32, #tpu.memory_space<vmem>>, %arg6: memref<16x96xf32, #tpu.memory_space<vmem>>, %arg7: memref<16x96xf32, #tpu.memory_space<vmem>>) attributes {dimension_semantics = [#tpu.dimension_semantics<parallel>, #tpu.dimension_semantics<parallel>, #tpu.dimension_semantics<arbitrary>], iteration_bounds = array<i64: 1, 1, 1>, scalar_prefetch = 0 : i64, scratch_operands = 1 : i64, tpu.core_type = #tpu.core_type<tc>, window_params = [{transform_indices = @transform_0, window_bounds = array<i64: 16, 32>}, {transform_indices = @transform_1, window_bounds = array<i64: 32, 96>}, {transform_indices = @transform_2, window_bounds = array<i64: 1, 96>}, {transform_indices = @transform_3, window_bounds = array<i64: 16, 96>}]} {
    %c0_i32 = arith.constant 0 : i32
    %0 = arith.cmpi eq, %arg2, %c0_i32 : i32
    %1 = arith.extui %0 : i1 to i32
    %c0_i32_0 = arith.constant 0 : i32
    %2 = arith.cmpi ne, %1, %c0_i32_0 : i32
    scf.if %2 {
      %cst_10 = arith.constant 0.000000e+00 : f32
      %12 = vector.broadcast %cst_10 : f32 to vector<16x96xf32>
      %c0_11 = arith.constant 0 : index
      %c0_12 = arith.constant 0 : index
      %13 = vector.load %arg7[%c0_11, %c0_12] : memref<16x96xf32, #tpu.memory_space<vmem>>, vector<16x96xf32>
      tpu.vector_store %arg7[%c0_11, %c0_12], %12 {strides = array<i32>} : memref<16x96xf32, #tpu.memory_space<vmem>>, vector<16x96xf32>,
    } else {
    }
    %c0 = arith.constant 0 : index
    %c0_1 = arith.constant 0 : index
    %3 = vector.load %arg7[%c0, %c0_1] : memref<16x96xf32, #tpu.memory_space<vmem>>, vector<16x96xf32>
    %c0_2 = arith.constant 0 : index
    %c0_3 = arith.constant 0 : index
    %4 = vector.load %arg3[%c0_2, %c0_3] : memref<16x32xf32, #tpu.memory_space<vmem>>, vector<16x32xf32>
    %c0_4 = arith.constant 0 : index
    %c0_5 = arith.constant 0 : index
    %5 = vector.load %arg4[%c0_4, %c0_5] : memref<32x96xf32, #tpu.memory_space<vmem>>, vector<32x96xf32>
    %cst = arith.constant dense<0.000000e+00> : vector<16x96xf32>
    %6 = tpu.matmul %4, %5, %cst {dimension_numbers = #tpu.dot_dimension_numbers<[1], [0], [0], [1], [0, 0, 1, 1], [], []>} : vector<16x32xf32>, vector<32x96xf32>, vector<16x96xf32> -> vector<16x96xf32>
    %7 = arith.addf %3, %6 : vector<16x96xf32>
    %c0_6 = arith.constant 0 : index
    %c0_7 = arith.constant 0 : index
    %8 = vector.load %arg7[%c0_6, %c0_7] : memref<16x96xf32, #tpu.memory_space<vmem>>, vector<16x96xf32>
    tpu.vector_store %arg7[%c0_6, %c0_7], %7 {strides = array<i32>} : memref<16x96xf32, #tpu.memory_space<vmem>>, vector<16x96xf32>,
    %c0_i32_8 = arith.constant 0 : i32
    %9 = arith.cmpi eq, %arg2, %c0_i32_8 : i32
    %10 = arith.extui %9 : i1 to i32
    %c0_i32_9 = arith.constant 0 : i32
    %11 = arith.cmpi ne, %10, %c0_i32_9 : i32
    scf.if %11 {
      %c0_10 = arith.constant 0 : index
      %c0_11 = arith.constant 0 : index
      %12 = vector.load %arg7[%c0_10, %c0_11] : memref<16x96xf32, #tpu.memory_space<vmem>>, vector<16x96xf32>
      %c0_12 = arith.constant 0 : index
      %c0_13 = arith.constant 0 : index
      %13 = vector.load %arg5[%c0_12, %c0_13] : memref<1x96xf32, #tpu.memory_space<vmem>>, vector<1x96xf32>
      %14 = vector.broadcast %13 : vector<1x96xf32> to vector<16x96xf32>
      %15 = arith.addf %12, %14 : vector<16x96xf32>
      %c0_14 = arith.constant 0 : index
      %c0_15 = arith.constant 0 : index
      %16 = vector.load %arg6[%c0_14, %c0_15] : memref<16x96xf32, #tpu.memory_space<vmem>>, vector<16x96xf32>
      tpu.vector_store %arg6[%c0_14, %c0_15], %15 {strides = array<i32>} : memref<16x96xf32, #tpu.memory_space<vmem>>, vector<16x96xf32>,
    } else {
    }
    return
  }
  func.func @transform_0(%arg0: i32, %arg1: i32, %arg2: i32) -> (i32, i32) {
    %c0_i32 = arith.constant 0 : i32
    return %arg1, %arg2 : i32, i32
  }
  func.func @transform_1(%arg0: i32, %arg1: i32, %arg2: i32) -> (i32, i32) {
    %c0_i32 = arith.constant 0 : i32
    return %arg2, %arg0 : i32, i32
  }
  func.func @transform_2(%arg0: i32, %arg1: i32, %arg2: i32) -> (i32, i32) {
    %c0_i32 = arith.constant 0 : i32
    %c0_i32_0 = arith.constant 0 : i32
    return %c0_i32, %arg0 : i32, i32
  }
  func.func @transform_3(%arg0: i32, %arg1: i32, %arg2: i32) -> (i32, i32) {
    %c0_i32 = arith.constant 0 : i32
    return %arg1, %arg0 : i32, i32
  }
}

</mosaic_0001>

<llo_original>
// kernel: tpu_custom_call.1
$region0: #{tpu_custom_call.1}
  #allocation0 [shape = 'u32[]', space=smem, size = 0x4, offset = 0x4, fixed_abs, tag = 'smem constant byte address 0x4 - core index']
  #allocation1 [shape = 'u32[144,128]{1,0:T(1,128)}', space=vmem, size = 0x12000, scoped, tag = 'internal scratch']
  #allocation2 [shape = 'f32[16,96]{1,0:T(8,128)}', space=vmem, size = 0x2000, scoped, tag = 'scratch operand']
  %s0 = inlined_call_operand.hbm [shape: f32[16,32], index: 0, kind: input, shape index: {}]
  %s1 = inlined_call_operand.hbm [shape: f32[32,96], index: 1, kind: input, shape index: {}]
  %s2 = inlined_call_operand.hbm [shape: f32[1,96], index: 2, kind: input, shape index: {}]
  %s3 = inlined_call_operand.hbm [shape: f32[16,96], index: 3, kind: output, shape index: {}]
  %s4 = sld [smem:[#allocation0]]
  $region42: #{tpu_custom_call.1} parent=0
    _
  %s6 = ssub.s32 1, %s4
  %s7 = scalar_select 0, %s6, %s4
  $region1: #{tpu_custom_call.1} parent=0
    #allocation3 [shape = 'u8[8192]{0}', space=vmem, size = 0x2000, scoped, tag = 'input window, operand 0, single buffered']
    #allocation4 [shape = 's32[1]{0}', space=sflag, size = 0x4, scoped, tag = 'scoped memory for tpu_custom_call.1']
    #allocation5 [shape = 's32[1]{0}', space=sflag, size = 0x4, scoped, tag = 'scoped memory for tpu_custom_call.1']
    #allocation6 [shape = 'u8[16384]{0}', space=vmem, size = 0x4000, scoped, tag = 'input window, operand 1, single buffered']
    #allocation7 [shape = 's32[1]{0}', space=sflag, size = 0x4, scoped, tag = 'scoped memory for tpu_custom_call.1']
    #allocation8 [shape = 'u8[512]{0}', space=vmem, size = 0x400, scoped, tag = 'input window, operand 2, single buffered']
    #allocation9 [shape = 'u8[8192]{0}', space=vmem, size = 0x2000, scoped, tag = 'output window, operand 0, single buffered']
    %8 = vsyncpa [#allocation4], 0
    %9 = vsyncpa [#allocation7], 0
    %10 = vsyncpa [#allocation5], 0
    // Predicated region
    $region2: #{tpu_custom_call.1} parent=1 // pred_check
      _
    $region3: #{tpu_custom_call.1} parent=1 // pred_check_branch
      %12 = sbr.rel (0) target = $region5
    $region4: #{tpu_custom_call.1} parent=1 // pred_region
      %s14 = ssub.s32 256, 256
      %15 = vsyncadd [#allocation4], %s14
      %s16 = sshll.u32 [#allocation3], 4
      %s17 = int_to_ptr.vmem [resolvable:$true] %s16
      %22 = dma.hbm_to_vmem [thread:$0]  %s0, 256, %s17, [#allocation4], 128, 128, 8
    $region5: #{tpu_custom_call.1} parent=1 // pred_fallthru
      _
    // Predicated region
    $region6: #{tpu_custom_call.1} parent=1 // pred_check
      _
    $region7: #{tpu_custom_call.1} parent=1 // pred_check_branch
      %24 = sbr.rel (0) target = $region9
    $region8: #{tpu_custom_call.1} parent=1 // pred_region
      %s26 = ssub.s32 512, 512
      %27 = vsyncadd [#allocation7], %s26
      %s28 = sshll.u32 [#allocation6], 4
      %s29 = int_to_ptr.vmem [resolvable:$true] %s28
      %34 = dma.hbm_to_vmem [thread:$0]  %s1, 512, %s29, [#allocation7], 128, 128, 8
    $region9: #{tpu_custom_call.1} parent=1 // pred_fallthru
      _
    // Predicated region
    $region10: #{tpu_custom_call.1} parent=1 // pred_check
      _
    $region11: #{tpu_custom_call.1} parent=1 // pred_check_branch
      %36 = sbr.rel (0) target = $region13
    $region12: #{tpu_custom_call.1} parent=1 // pred_region
      %s38 = ssub.s32 16, 16
      %39 = vsyncadd [#allocation7], %s38
      %s41 = sshll.u32 [#allocation8], 4
      %s42 = int_to_ptr.vmem [resolvable:$true] %s41
      %44 = dma.hbm_to_vmem [thread:$0]  %s2, 16, %s42, [#allocation7]
    $region13: #{tpu_custom_call.1} parent=1 // pred_fallthru
      _
    // Predicated region
    $region14: #{tpu_custom_call.1} parent=1 // pred_check
      _
    $region15: #{tpu_custom_call.1} parent=1 // pred_check_branch
      %46 = sbr.rel (0) target = $region17
    $region16: #{tpu_custom_call.1} parent=1 // pred_region
      %47 = dma.done [#allocation4], 256
    $region17: #{tpu_custom_call.1} parent=1 // pred_fallthru
      _
    // Predicated region
    $region18: #{tpu_custom_call.1} parent=1 // pred_check
      _
    $region19: #{tpu_custom_call.1} parent=1 // pred_check_branch
      %49 = sbr.rel (0) target = $region21
    $region20: #{tpu_custom_call.1} parent=1 // pred_region
      %50 = dma.done [#allocation7], 512
    $region21: #{tpu_custom_call.1} parent=1 // pred_fallthru
      _
    // Predicated region
    $region22: #{tpu_custom_call.1} parent=1 // pred_check
      _
    $region23: #{tpu_custom_call.1} parent=1 // pred_check_branch
      %52 = sbr.rel (0) target = $region25
    $region24: #{tpu_custom_call.1} parent=1 // pred_region
      %53 = dma.done [#allocation7], 16
    $region25: #{tpu_custom_call.1} parent=1 // pred_fallthru
      _
    %p54 = scmp.eq.s32.totalorder 0, 0
    // Predicated region
    $region26: #{tpu_custom_call.1} parent=1 // pred_check
      %p55 = pneg %p54
    $region27: #{tpu_custom_call.1} parent=1 // pred_check_branch
      %57 = sbr.rel (%p55) target = $region29
    $region28: #{tpu_custom_call.1} parent=1 // pred_region
      %vm58 = vcmask 785408
      %59 = vst.msk [vmem:[#allocation2] sm:$0xff] %vm58, 0.0
      %60 = vst.msk [vmem:[#allocation2 + $0x8] sm:$0xff] %vm58, 0.0
    $region29: #{tpu_custom_call.1} parent=1 // pred_fallthru
      _
    %v61 = vld [vmem:[#allocation2] sm:$0xff]
    %v62 = vld [vmem:[#allocation2 + $0x8] sm:$0xff]
    %v63 = vld [vmem:[#allocation3] sm:$0xff]
    %v64 = vld [vmem:[#allocation3 + $0x8] sm:$0xff]
    %v65 = vld [vmem:[#allocation6] sm:$0xff]
    %v66 = vld [vmem:[#allocation6 + $0x8] sm:$0xff]
    %v67 = vld [vmem:[#allocation6 + $0x10] sm:$0xff]
    %v68 = vld [vmem:[#allocation6 + $0x18] sm:$0xff]
    %vm69 = vcmask 261120
    %v71 = vsel %vm69, %v63, 0
    %v74 = vsel %vm69, %v64, 0
    %76 = vmatprep.subr.mxu0 0.0
    %77 = vmatpush1.msra.mxu0 %v65
    %78 = vmatprep.subr.mxu0 0.0
    %79 = vmatpush1.msra.mxu0 %v66
    %80 = vmatprep.subr.mxu0 0.0
    %81 = vmatpush1.msra.mxu0 %v67
    %82 = vmatprep.subr.mxu0 0.0
    %83 = vmatpush1.msra.mxu0 %v68
    %84 = vmatprep.subr.mxu0 0.0
    %85 = vmatpush1.msra.mxu0 0.0
    %86 = vmatprep.subr.mxu0 0.0
    %87 = vmatpush1.msra.mxu0 0.0
    %88 = vmatprep.subr.mxu0 0.0
    %89 = vmatpush1.msra.mxu0 0.0
    %90 = vmatprep.subr.mxu0 0.0
    %91 = vmatpush1.msra.mxu0 0.0
    %92 = vmatprep.subr.mxu0 0.0
    %93 = vmatpush1.msra.mxu0 0.0
    %94 = vmatprep.subr.mxu0 0.0
    %95 = vmatpush1.msra.mxu0 0.0
    %96 = vmatprep.subr.mxu0 0.0
    %97 = vmatpush1.msra.mxu0 0.0
    %98 = vmatprep.subr.mxu0 0.0
    %99 = vmatpush1.msra.mxu0 0.0
    %100 = vmatprep.subr.mxu0 0.0
    %101 = vmatpush1.msra.mxu0 0.0
    %102 = vmatprep.subr.mxu0 0.0
    %103 = vmatpush1.msra.mxu0 0.0
    %104 = vmatprep.subr.mxu0 0.0
    %105 = vmatpush1.msra.mxu0 0.0
    %106 = vmatprep.subr.mxu0 0.0
    %107 = vmatpush1.msra.mxu0 0.0
    %108 = vmatprep.subr.mxu0 0.0
    %109 = vmatpush1.msra.mxu0 0.0
    %110 = vmatprep.subr.mxu0 0.0
    %111 = vmatpush1.msra.mxu0 0.0
    %112 = vmatprep.subr.mxu0 0.0
    %113 = vmatpush1.msra.mxu0 0.0
    %114 = vmatprep.subr.mxu0 0.0
    %115 = vmatpush1.msra.mxu0 0.0
    %116 = vmatprep.subr.mxu0 0.0
    %117 = vmatpush1.msra.mxu0 0.0
    %118 = vmatprep.subr.mxu0 0.0
    %119 = vmatpush1.msra.mxu0 0.0
    %120 = vmatprep.subr.mxu0 0.0
    %121 = vmatpush1.msra.mxu0 0.0
    %122 = vmatprep.subr.mxu0 0.0
    %123 = vmatpush1.msra.mxu0 0.0
    %124 = vmatprep.subr.mxu0 0.0
    %125 = vmatpush1.msra.mxu0 0.0
    %126 = vmatprep.subr.mxu0 0.0
    %127 = vmatpush1.msra.mxu0 0.0
    %128 = vmatprep.subr.mxu0 0.0
    %129 = vmatpush1.msra.mxu0 0.0
    %130 = vmatprep.subr.mxu0 0.0
    %131 = vmatpush1.msra.mxu0 0.0
    %132 = vmatprep.subr.mxu0 0.0
    %133 = vmatpush1.msra.mxu0 0.0
    %134 = vmatprep.subr.mxu0 0.0
    %135 = vmatpush1.msra.mxu0 0.0
    %136 = vmatprep.subr.mxu0 0.0
    %137 = vmatpush1.msra.mxu0 0.0
    %138 = vmatprep.subr.mxu0 0.0
    %139 = vmatpush1.msra.mxu0 0.0
    %140 = vmatprep.mubr.f32.mxu0 0.0
    %141 = vmatmul.mubr.f32.gmra.mrb[0].mxu0 %v71
    %v142 = vpop.f32.mrb[0].mxu0
    %v143 = vadd.f32 0.0, %v142
    %v144 = vpop.f32.mrb[0].mxu0
    %145 = vmatprep.mubr.f32.mxu0 0.0
    %146 = vmatmul.mubr.f32.gmra.mrb[0].mxu0 %v74
    %v147 = vpop.f32.mrb[0].mxu0
    %v148 = vadd.f32 0.0, %v147
    %v149 = vpop.f32.mrb[0].mxu0
    %150 = vdwg.mxu0
    %v151 = vadd.f32 %v61, %v143
    %v152 = vadd.f32 %v62, %v148
    %vm153 = vcmask 785408
    %154 = vst.msk [vmem:[#allocation2] sm:$0xff] %vm153, %v151
    %155 = vst.msk [vmem:[#allocation2 + $0x8] sm:$0xff] %vm153, %v152
    // Predicated region
    $region30: #{tpu_custom_call.1} parent=1 // pred_check
      %p156 = pneg %p54
    $region31: #{tpu_custom_call.1} parent=1 // pred_check_branch
      %158 = sbr.rel (%p156) target = $region33
    $region32: #{tpu_custom_call.1} parent=1 // pred_region
      %v159 = vld [vmem:[#allocation2] sm:$0xff]
      %v160 = vld [vmem:[#allocation2 + $0x8] sm:$0xff]
      %v161 = vld [vmem:[#allocation8] sm:$0x1]
      %v163 = vlaneseq
      %v164 = vshrl.u32 %v163, 7
      %v165 = vsub.s32 0, %v164
      %v166 = vrot.slane %v161, %v165
      %v168 = vadd.f32 %v159, %v166
      %v169 = vadd.f32 %v160, %v166
      %170 = vst.msk [vmem:[#allocation9] sm:$0xff] %vm153, %v168
      %171 = vst.msk [vmem:[#allocation9 + $0x8] sm:$0xff] %vm153, %v169
    $region33: #{tpu_custom_call.1} parent=1 // pred_fallthru
      _
    // Predicated region
    $region34: #{tpu_custom_call.1} parent=1 // pred_check
      _
    $region35: #{tpu_custom_call.1} parent=1 // pred_check_branch
      %173 = sbr.rel (0) target = $region37
    $region36: #{tpu_custom_call.1} parent=1 // pred_region
      %s175 = ssub.s32 256, 256
      %176 = vsyncadd [#allocation5], %s175
      %s177 = sshll.u32 [#allocation9], 4
      %s178 = int_to_ptr.vmem [resolvable:$true] %s177
      %183 = dma.vmem_to_hbm [thread:$0]  %s178, 256, %s3, [#allocation5], 128, 128, 8
    $region37: #{tpu_custom_call.1} parent=1 // pred_fallthru
      _
    // Predicated region
    $region38: #{tpu_custom_call.1} parent=1 // pred_check
      _
    $region39: #{tpu_custom_call.1} parent=1 // pred_check_branch
      %185 = sbr.rel (0) target = $region41
    $region40: #{tpu_custom_call.1} parent=1 // pred_region
      %186 = dma.done [#allocation5], 256
    $region41: #{tpu_custom_call.1} parent=1 // pred_fallthru
      _
    %187 = vsyncpa [#allocation4], 1
    %188 = vsyncpa [#allocation7], 1
    %189 = vsyncpa [#allocation5], 1

</llo_original>
